<compile_context>
chip_gen: v7x
topology: tpu7x:2x2x1
jax: 0.10.0
libtpu: 0.0.40
codegen_flags: <defaults>
</compile_context>

<pallas_src>
import jax
import jax.numpy as jnp
from jax.experimental import pallas as pl
from jax.experimental.pallas import tpu as pltpu

_SUBLANE = 8  # f32 sublane count


def _round_up(x, m):
    return ((x + m - 1) // m) * m


def node_apply_kernel(h_ref, c_ref, wh_ref, wc_ref, o_ref):
    # cat([h, c], dim=1) @ W.T  ==  h @ Wh + c @ Wc   (Wh/Wc = transposed halves of W)
    z = jnp.dot(h_ref[...], wh_ref[...], preferred_element_type=jnp.float32)
    z = z + jnp.dot(c_ref[...], wc_ref[...], preferred_element_type=jnp.float32)
    # activation (ReLU)
    z = jnp.maximum(z, 0.0)
    # F.normalize(p=2, dim=1): x / max(||x||_2, 1e-12)
    #   == x * rsqrt(max(sum(x^2), 1e-24))   -- single EUP op in the epilogue
    ssq = jnp.sum(z * z, axis=1, keepdims=True)
    z = z * jax.lax.rsqrt(jnp.maximum(ssq, 1e-24))
    o_ref[...] = z.astype(o_ref.dtype)


def node_apply(h, c, w_h_t, w_c_t, *, max_block_rows=8192,
               vmem_budget_bytes=24 * 1024 * 1024):
    """h: (N, F_in), c: (N, F_in), w_h_t/w_c_t: (F_in, F_out) -> (N, F_out) f32."""
    n, f_in = h.shape
    f_out = w_h_t.shape[1]
    in_itemsize = jnp.dtype(h.dtype).itemsize
    w_itemsize = jnp.dtype(w_h_t.dtype).itemsize
    out_itemsize = 4  # f32 output

    # Honest VMEM accounting (no padding):
    #   - h and c row blocks: double-buffered by the pipeline
    #   - f32 output block:   double-buffered
    #   - weight halves:      resident (constant index_map); default double-buffer
    #                         is only ~4*F_in*F_out*itemsize ~ 30 KiB, negligible.
    weight_bytes = 2 * 2 * f_in * f_out * w_itemsize
    row_bytes_db = 2 * 2 * f_in * in_itemsize + 2 * f_out * out_itemsize

    tn_vmem = max(_SUBLANE, (vmem_budget_bytes - weight_bytes) // row_bytes_db)
    tn_cap = max(_SUBLANE, (min(max_block_rows, tn_vmem) // _SUBLANE) * _SUBLANE)

    # Keep num_tiles >= 2 (and even for large grids) so the single "parallel"
    # row axis balances across the two TensorCores on v7x.
    if n > tn_cap:
        num_tiles = pl.cdiv(n, tn_cap)
        if num_tiles % 2:
            num_tiles += 1
        tn = _round_up(pl.cdiv(n, num_tiles), _SUBLANE)
    elif n >= 2 * _SUBLANE:
        tn = _round_up(pl.cdiv(n, 2), _SUBLANE)
    else:
        tn = _round_up(max(n, 1), _SUBLANE)
    num_tiles = pl.cdiv(n, tn)

    footprint = (2 * tn * 2 * f_in * in_itemsize       # h + c blocks, 2 buffers each
                 + 2 * tn * f_out * out_itemsize       # output block, 2 buffers
                 + weight_bytes)                       # resident weight halves
    vmem_limit = int(min(48 * 1024 * 1024,
                         max(footprint + 4 * 1024 * 1024, 8 * 1024 * 1024)))

    cost = pl.CostEstimate(
        flops=2 * 2 * n * f_in * f_out,                # two MXU matmuls
        transcendentals=n,                             # one rsqrt per row
        bytes_accessed=2 * n * f_in * in_itemsize
        + 2 * f_in * f_out * w_itemsize
        + n * f_out * out_itemsize,
    )

    return pl.pallas_call(
        node_apply_kernel,
        out_shape=jax.ShapeDtypeStruct((n, f_out), jnp.float32),
        grid_spec=pltpu.PrefetchScalarGridSpec(
            num_scalar_prefetch=0,
            grid=(num_tiles,),
            in_specs=[
                pl.BlockSpec((tn, f_in), lambda i: (i, 0)),       # h rows stream
                pl.BlockSpec((tn, f_in), lambda i: (i, 0)),       # c rows stream
                pl.BlockSpec((f_in, f_out), lambda i: (0, 0)),    # Wh resident
                pl.BlockSpec((f_in, f_out), lambda i: (0, 0)),    # Wc resident
            ],
            out_specs=pl.BlockSpec((tn, f_out), lambda i: (i, 0)),
        ),
        compiler_params=pltpu.CompilerParams(
            dimension_semantics=("parallel",),   # row tiles shard across TCs (v7x)
            vmem_limit_bytes=vmem_limit,
        ),
        cost_estimate=cost,
    )(h, c, w_h_t, w_c_t)


def reference(h, c, w):
    """Pure-JAX reference of the forward pass (w: (F_out, 2*F_in))."""
    bundle = jnp.concatenate([h, c], axis=1) @ w.T
    bundle = jnp.maximum(bundle, 0.0)
    norm = jnp.sqrt(jnp.sum(bundle * bundle, axis=1, keepdims=True))
    return bundle / jnp.maximum(norm, 1e-12)


if __name__ == "__main__":
    # Small shapes consistent with the module: N nodes, in_feats, out_feats.
    # N deliberately not a multiple of the row tile and feature dims not a
    # multiple of 128 to exercise the boundary-block / multi-tile path.
    N, in_feats, out_feats = 333, 48, 40

    key = jax.random.PRNGKey(0)
    k_h, k_c, k_mu, k_rho, k_eps = jax.random.split(key, 5)

    h = jax.random.normal(k_h, (N, in_feats), dtype=jnp.float32)
    c = jax.random.normal(k_c, (N, in_feats), dtype=jnp.float32)

    # BayesianLinear(in_feats * 2, out_feats, bias=False) parameters, sampled once
    # via the reparameterization trick (deterministic PRNG) in plain-JAX glue.
    w_mu = 0.1 * jax.random.normal(k_mu, (out_feats, 2 * in_feats), dtype=jnp.float32)
    w_rho = jnp.full((out_feats, 2 * in_feats), -3.0, dtype=jnp.float32)
    eps = jax.random.normal(k_eps, (out_feats, 2 * in_feats), dtype=jnp.float32)
    w = w_mu + jnp.log1p(jnp.exp(w_rho)) * eps            # sampled weight (F_out, 2*F_in)

    # Split the sampled weight into the halves acting on h and on c, pre-transposed.
    w_h_t = jnp.transpose(w[:, :in_feats])                 # (F_in, F_out)
    w_c_t = jnp.transpose(w[:, in_feats:])                 # (F_in, F_out)

    out = node_apply(h, c, w_h_t, w_c_t)
    out = jax.block_until_ready(out)

    ref = reference(h, c, w)
    assert out.shape == (N, out_feats)
    assert jnp.allclose(out, ref, atol=1e-5, rtol=1e-5), "mismatch vs reference"

    print("KERNEL_OK")
</pallas_src>

<mosaic_0001>
module attributes {stable_mosaic.version = 11 : i64} {
  func.func @node_apply_kernel(%arg0: i32, %arg1: memref<168x48xf32, #tpu.memory_space<vmem>>, %arg2: memref<168x48xf32, #tpu.memory_space<vmem>>, %arg3: memref<48x40xf32, #tpu.memory_space<vmem>>, %arg4: memref<48x40xf32, #tpu.memory_space<vmem>>, %arg5: memref<168x40xf32, #tpu.memory_space<vmem>>) attributes {dimension_semantics = [#tpu.dimension_semantics<parallel>], iteration_bounds = array<i64: 2>, scalar_prefetch = 0 : i64, scratch_operands = 0 : i64, tpu.core_type = #tpu.core_type<tc>, window_params = [{transform_indices = @transform_0, window_bounds = array<i64: 168, 48>}, {transform_indices = @transform_1, window_bounds = array<i64: 168, 48>}, {pipeline_mode = #tpu.pipeline_mode<synchronous>, transform_indices = @transform_2, window_bounds = array<i64: 48, 40>}, {pipeline_mode = #tpu.pipeline_mode<synchronous>, transform_indices = @transform_3, window_bounds = array<i64: 48, 40>}, {transform_indices = @transform_4, window_bounds = array<i64: 168, 40>}]} {
    %c0 = arith.constant 0 : index
    %c0_0 = arith.constant 0 : index
    %0 = vector.load %arg1[%c0, %c0_0] : memref<168x48xf32, #tpu.memory_space<vmem>>, vector<168x48xf32>
    %c0_1 = arith.constant 0 : index
    %c0_2 = arith.constant 0 : index
    %1 = vector.load %arg3[%c0_1, %c0_2] : memref<48x40xf32, #tpu.memory_space<vmem>>, vector<48x40xf32>
    %cst = arith.constant dense<0.000000e+00> : vector<168x40xf32>
    %2 = tpu.matmul %0, %1, %cst {dimension_numbers = #tpu.dot_dimension_numbers<[1], [0], [0], [1], [0, 0, 1, 1], [], []>} : vector<168x48xf32>, vector<48x40xf32>, vector<168x40xf32> -> vector<168x40xf32>
    %c0_3 = arith.constant 0 : index
    %c0_4 = arith.constant 0 : index
    %3 = vector.load %arg2[%c0_3, %c0_4] : memref<168x48xf32, #tpu.memory_space<vmem>>, vector<168x48xf32>
    %c0_5 = arith.constant 0 : index
    %c0_6 = arith.constant 0 : index
    %4 = vector.load %arg4[%c0_5, %c0_6] : memref<48x40xf32, #tpu.memory_space<vmem>>, vector<48x40xf32>
    %cst_7 = arith.constant dense<0.000000e+00> : vector<168x40xf32>
    %5 = tpu.matmul %3, %4, %cst_7 {dimension_numbers = #tpu.dot_dimension_numbers<[1], [0], [0], [1], [0, 0, 1, 1], [], []>} : vector<168x48xf32>, vector<48x40xf32>, vector<168x40xf32> -> vector<168x40xf32>
    %6 = arith.addf %2, %5 : vector<168x40xf32>
    %cst_8 = arith.constant 0.000000e+00 : f32
    %7 = vector.broadcast %cst_8 : f32 to vector<168x40xf32>
    %8 = arith.maximumf %6, %7 : vector<168x40xf32>
    %9 = arith.mulf %8, %8 : vector<168x40xf32>
    %cst_9 = arith.constant dense<0.000000e+00> : vector<168xf32>
    %10 = vector.multi_reduction <add>, %9, %cst_9 [1] : vector<168x40xf32> to vector<168xf32>
    %11 = vector.shape_cast %10 : vector<168xf32> to vector<168x1xf32>
    %cst_10 = arith.constant 1.000000e-24 : f32
    %12 = vector.broadcast %cst_10 : f32 to vector<168x1xf32>
    %13 = arith.maximumf %11, %12 : vector<168x1xf32>
    %14 = math.rsqrt %13 : vector<168x1xf32>
    %15 = vector.broadcast %14 : vector<168x1xf32> to vector<168x40xf32>
    %16 = arith.mulf %8, %15 : vector<168x40xf32>
    %c0_11 = arith.constant 0 : index
    %c0_12 = arith.constant 0 : index
    %17 = vector.load %arg5[%c0_11, %c0_12] : memref<168x40xf32, #tpu.memory_space<vmem>>, vector<168x40xf32>
    tpu.vector_store %arg5[%c0_11, %c0_12], %16 {strides = array<i32>} : memref<168x40xf32, #tpu.memory_space<vmem>>, vector<168x40xf32>,
    return
  }
  func.func @transform_0(%arg0: i32) -> (i32, i32) {
    %c0_i32 = arith.constant 0 : i32
    %c0_i32_0 = arith.constant 0 : i32
    return %arg0, %c0_i32 : i32, i32
  }
  func.func @transform_1(%arg0: i32) -> (i32, i32) {
    %c0_i32 = arith.constant 0 : i32
    %c0_i32_0 = arith.constant 0 : i32
    return %arg0, %c0_i32 : i32, i32
  }
  func.func @transform_2(%arg0: i32) -> (i32, i32) {
    %c0_i32 = arith.constant 0 : i32
    %c0_i32_0 = arith.constant 0 : i32
    %c0_i32_1 = arith.constant 0 : i32
    return %c0_i32, %c0_i32_0 : i32, i32
  }
  func.func @transform_3(%arg0: i32) -> (i32, i32) {
    %c0_i32 = arith.constant 0 : i32
    %c0_i32_0 = arith.constant 0 : i32
    %c0_i32_1 = arith.constant 0 : i32
    return %c0_i32, %c0_i32_0 : i32, i32
  }
  func.func @transform_4(%arg0: i32) -> (i32, i32) {
    %c0_i32 = arith.constant 0 : i32
    %c0_i32_0 = arith.constant 0 : i32
    return %arg0, %c0_i32 : i32, i32
  }
}

</mosaic_0001>

<llo_original>
// kernel: tpu_custom_call.1
$region0: #{tpu_custom_call.1}
  #allocation0 [shape = 'u32[]', space=smem, size = 0x4, offset = 0x4, fixed_abs, tag = 'smem constant byte address 0x4 - core index']
  #allocation1 [shape = 'u32[144,128]{1,0:T(1,128)}', space=vmem, size = 0x12000, scoped, tag = 'internal scratch']
  %s0 = inlined_call_operand.vmem [shape: f32[333,48], index: 0, kind: input, shape index: {}]
  %s1 = inlined_call_operand.vmem [shape: f32[333,48], index: 1, kind: input, shape index: {}]
  %s2 = inlined_call_operand.vmem [shape: f32[48,40], index: 2, kind: input, shape index: {}]
  %s3 = inlined_call_operand.vmem [shape: f32[48,40], index: 3, kind: input, shape index: {}]
  %s4 = inlined_call_operand.vmem [shape: f32[333,40], index: 4, kind: output, shape index: {}]
  %s5 = sld [smem:[#allocation0]]
  $region49: #{tpu_custom_call.1} parent=0
    _
  %s7 = ssub.s32 1, %s5
  %s8 = scalar_select 0, %s7, %s5
  loop: start=0, step=1, limit=4
  $region2: #{tpu_custom_call.1} parent=0 // loop_pre_header
    _
  $region3: #{tpu_custom_call.1} parent=0 // loop_header
    %s10 = sphi 0, %s14
    %p11 = scmp.ge.s32.totalorder %s10, 4
    %s20 = sphi 0, %s22
    %s23 = sphi 0, %s20
    %s24 = sphi 0, %s23
    %s40 = sphi 0, %s24
    %s46 = sphi 0, %s48
    %s49 = sphi 0, %s46
    %s50 = sphi 0, %s49
    %s66 = sphi 0, %s50
    %s70 = sphi 0, %s70
    %s72 = sphi 0, %s70
    %s73 = sphi 0, %s72
    %s87 = sphi 0, %s73
    %s91 = sphi 0, %s91
    %s93 = sphi 0, %s91
    %s94 = sphi 0, %s93
    %s108 = sphi 0, %s94
    %s114 = sphi 0, %s116
    %s117 = sphi 0, %s114
    %s118 = sphi 0, %s117
    %s134 = sphi 0, %s118
  $region4: #{tpu_custom_call.1} parent=0 // loop_header_branch
    %13 = sbr.rel (%p11) target = $region8
  $region5: #{tpu_custom_call.1} parent=0 // loop_body
    %s15 = ssub.s32 %s10, 1
    %s16 = ssub.s32 %s10, 2
    %s17 = sadd.s32 %s10, 1
    %s18 = ssub.s32 %s10, %s17
    %p19 = scmp.eq.s32.totalorder %s18, 0
    %s21 = sadd.s32 %s20, 1
    %s22 = scalar_select %p19, %s20, %s21
    %p25 = pneg %p19
    %p26 = scmp.eq.s32.totalorder %s10, 1
    %p27 = por %p25, %p26
    %p28 = scmp.ne.s32.totalorder %s20, %s23
    %p29 = scmp.eq.s32.totalorder %s10, 0
    %p30 = por %p28, %p29
    %p31 = scmp.ne.s32.totalorder %s20, %s23
    %p32 = scmp.eq.s32.totalorder %s15, 1
    %p33 = por %p31, %p32
    %p34 = scmp.ne.s32.totalorder %s23, %s24
    %p35 = scmp.eq.s32.totalorder %s15, 0
    %p36 = por %p34, %p35
    %p37 = scmp.ne.s32.totalorder %s23, %s24
    %p38 = scmp.eq.s32.totalorder %s16, 1
    %p39 = por %p37, %p38
    %p41 = scmp.ne.s32.totalorder %s24, %s40
    %p42 = scmp.eq.s32.totalorder %s16, 0
    %p43 = por %p41, %p42
    %s44 = ssub.s32 %s10, %s17
    %p45 = scmp.eq.s32.totalorder %s44, 0
    %s47 = sadd.s32 %s46, 1
    %s48 = scalar_select %p45, %s46, %s47
    %p51 = pneg %p45
    %p52 = scmp.eq.s32.totalorder %s10, 1
    %p53 = por %p51, %p52
    %p54 = scmp.ne.s32.totalorder %s46, %s49
    %p55 = scmp.eq.s32.totalorder %s10, 0
    %p56 = por %p54, %p55
    %p57 = scmp.ne.s32.totalorder %s46, %s49
    %p58 = scmp.eq.s32.totalorder %s15, 1
    %p59 = por %p57, %p58
    %p60 = scmp.ne.s32.totalorder %s49, %s50
    %p61 = scmp.eq.s32.totalorder %s15, 0
    %p62 = por %p60, %p61
    %p63 = scmp.ne.s32.totalorder %s49, %s50
    %p64 = scmp.eq.s32.totalorder %s16, 1
    %p65 = por %p63, %p64
    %p67 = scmp.ne.s32.totalorder %s50, %s66
    %p68 = scmp.eq.s32.totalorder %s16, 0
    %p69 = por %p67, %p68
    %s71 = sadd.s32 %s70, 1
    %p74 = scmp.eq.s32.totalorder %s10, 1
    %p75 = scmp.ne.s32.totalorder %s70, %s72
    %p76 = scmp.eq.s32.totalorder %s10, 0
    %p77 = por %p75, %p76
    %p78 = scmp.ne.s32.totalorder %s70, %s72
    %p79 = scmp.eq.s32.totalorder %s15, 1
    %p80 = por %p78, %p79
    %p81 = scmp.ne.s32.totalorder %s72, %s73
    %p82 = scmp.eq.s32.totalorder %s15, 0
    %p83 = por %p81, %p82
    %p84 = scmp.ne.s32.totalorder %s72, %s73
    %p85 = scmp.eq.s32.totalorder %s16, 1
    %p86 = por %p84, %p85
    %p88 = scmp.ne.s32.totalorder %s73, %s87
    %p89 = scmp.eq.s32.totalorder %s16, 0
    %p90 = por %p88, %p89
    %s92 = sadd.s32 %s91, 1
    %p95 = scmp.eq.s32.totalorder %s10, 1
    %p96 = scmp.ne.s32.totalorder %s91, %s93
    %p97 = scmp.eq.s32.totalorder %s10, 0
    %p98 = por %p96, %p97
    %p99 = scmp.ne.s32.totalorder %s91, %s93
    %p100 = scmp.eq.s32.totalorder %s15, 1
    %p101 = por %p99, %p100
    %p102 = scmp.ne.s32.totalorder %s93, %s94
    %p103 = scmp.eq.s32.totalorder %s15, 0
    %p104 = por %p102, %p103
    %p105 = scmp.ne.s32.totalorder %s93, %s94
    %p106 = scmp.eq.s32.totalorder %s16, 1
    %p107 = por %p105, %p106
    %p109 = scmp.ne.s32.totalorder %s94, %s108
    %p110 = scmp.eq.s32.totalorder %s16, 0
    %p111 = por %p109, %p110
    %s112 = ssub.s32 %s10, %s17
    %p113 = scmp.eq.s32.totalorder %s112, 0
    %s115 = sadd.s32 %s114, 1
    %s116 = scalar_select %p113, %s114, %s115
    %p119 = pneg %p113
    %p120 = scmp.eq.s32.totalorder %s10, 1
    %p121 = por %p119, %p120
    %p122 = scmp.ne.s32.totalorder %s114, %s117
    %p123 = scmp.eq.s32.totalorder %s10, 0
    %p124 = por %p122, %p123
    %p125 = scmp.ne.s32.totalorder %s114, %s117
    %p126 = scmp.eq.s32.totalorder %s15, 1
    %p127 = por %p125, %p126
    %p128 = scmp.ne.s32.totalorder %s117, %s118
    %p129 = scmp.eq.s32.totalorder %s15, 0
    %p130 = por %p128, %p129
    %p131 = scmp.ne.s32.totalorder %s117, %s118
    %p132 = scmp.eq.s32.totalorder %s16, 1
    %p133 = por %p131, %p132
    %p135 = scmp.ne.s32.totalorder %s118, %s134
    %p136 = scmp.eq.s32.totalorder %s16, 0
    %p137 = por %p135, %p136
    %p138 = scmp.le.s32.totalorder 1, %s10
    %p139 = scmp.lt.s32.totalorder %s10, 3
    %p140 = pnand %p138, %p139
    %p141 = pneg %p140
    // Predicated region
    $region9: #{tpu_custom_call.1} parent=5 // pred_check
      _
    $region10: #{tpu_custom_call.1} parent=5 // pred_check_branch
      %143 = sbr.rel (%p140) target = $region12
    $region11: #{tpu_custom_call.1} parent=5 // pred_region
      %s144 = ssub.s32 %s10, 1
      // Predicated region
      $region13: #{tpu_custom_call.1} parent=11 // pred_check
        %p145 = pneg %p83
      $region14: #{tpu_custom_call.1} parent=11 // pred_check_branch
        %147 = sbr.rel (%p145) target = $region16
      $region15: #{tpu_custom_call.1} parent=11 // pred_region
        _
      $region16: #{tpu_custom_call.1} parent=11 // pred_fallthru
        _
      // Predicated region
      $region17: #{tpu_custom_call.1} parent=11 // pred_check
        %p148 = pneg %p104
      $region18: #{tpu_custom_call.1} parent=11 // pred_check_branch
        %150 = sbr.rel (%p148) target = $region20
      $region19: #{tpu_custom_call.1} parent=11 // pred_region
        _
      $region20: #{tpu_custom_call.1} parent=11 // pred_fallthru
        _
    $region12: #{tpu_custom_call.1} parent=5 // pred_fallthru
      _
    %p151 = scmp.lt.s32.totalorder %s10, 2
    // Predicated region
    $region21: #{tpu_custom_call.1} parent=5 // pred_check
      %p152 = pneg %p151
    $region22: #{tpu_custom_call.1} parent=5 // pred_check_branch
      %154 = sbr.rel (%p152) target = $region24
    $region23: #{tpu_custom_call.1} parent=5 // pred_region
      // Predicated region
      $region25: #{tpu_custom_call.1} parent=23 // pred_check
        %p155 = pneg %p30
      $region26: #{tpu_custom_call.1} parent=23 // pred_check_branch
        %157 = sbr.rel (%p155) target = $region28
      $region27: #{tpu_custom_call.1} parent=23 // pred_region
        %s158 = smul.u32 21, %s10
        %p159 = scmp.lt.s32.totalorder %s158, 41
        %s160 = scalar_select %p159, %s158, 41
        %s161 = smul.addr %s160, 8
        %s162 = scalar_lea.vmem %s0, %s161
        %s163 = smul.u32 21, %s10
      $region28: #{tpu_custom_call.1} parent=23 // pred_fallthru
        _
      // Predicated region
      $region29: #{tpu_custom_call.1} parent=23 // pred_check
        %p164 = pneg %p56
      $region30: #{tpu_custom_call.1} parent=23 // pred_check_branch
        %166 = sbr.rel (%p164) target = $region32
      $region31: #{tpu_custom_call.1} parent=23 // pred_region
        %s167 = smul.u32 21, %s10
        %p168 = scmp.lt.s32.totalorder %s167, 41
        %s169 = scalar_select %p168, %s167, 41
        %s170 = smul.addr %s169, 8
        %s171 = scalar_lea.vmem %s1, %s170
        %s172 = smul.u32 21, %s10
      $region32: #{tpu_custom_call.1} parent=23 // pred_fallthru
        _
    $region24: #{tpu_custom_call.1} parent=5 // pred_fallthru
      _
    %p173 = scmp.le.s32.totalorder 1, %s10
    %p174 = scmp.lt.s32.totalorder %s10, 3
    %p175 = pnand %p173, %p174
    %p176 = pneg %p175
    // Predicated region
    $region33: #{tpu_custom_call.1} parent=5 // pred_check
      _
    $region34: #{tpu_custom_call.1} parent=5 // pred_check_branch
      %178 = sbr.rel (%p175) target = $region36
    $region35: #{tpu_custom_call.1} parent=5 // pred_region
      %s179 = ssub.s32 %s10, 1
      %s180 = smul.u32 21, %s15
      %p181 = scmp.lt.s32.totalorder %s180, 41
      %s182 = scalar_select %p181, %s180, 41
      %s183 = smul.addr %s182, 8
      %s184 = scalar_lea.vmem %s0, %s183
      %p185 = pneg %p36
      %p186 = pneg %p33
      %s187 = smul.u32 21, %s15
      %p188 = scmp.lt.s32.totalorder %s187, 41
      %s189 = scalar_select %p188, %s187, 41
      %s190 = smul.addr %s189, 8
      %s191 = scalar_lea.vmem %s1, %s190
      %p192 = pneg %p62
      %p193 = pneg %p59
      %p194 = pneg %p83
      %p195 = pneg %p80
      %p196 = pneg %p104
      %p197 = pneg %p101
      %p198 = pneg %p130
      %p199 = pneg %p127
      %s200 = smul.u32 21, %s15
      %p201 = scmp.lt.s32.totalorder %s200, 41
      %s202 = scalar_select %p201, %s200, 41
      %s203 = smul.addr %s202, 8
      %s204 = scalar_lea.vmem %s4, %s203
      %s205 = smul.u32 21, %s15
      %p206 = scmp.lt.s32.totalorder %s205, 41
      %s207 = scalar_select %p206, %s205, 41
      %s208 = smul.addr %s207, 8
      %s209 = scalar_lea.vmem %s0, %s208
      %s210 = smul.u32 21, %s15
      %s211 = smul.u32 21, %s15
      %p212 = scmp.lt.s32.totalorder %s211, 41
      %s213 = scalar_select %p212, %s211, 41
      %s214 = smul.addr %s213, 8
      %s215 = scalar_lea.vmem %s1, %s214
      %s216 = smul.u32 21, %s15
      %s217 = smul.u32 21, %s15
      %p218 = scmp.lt.s32.totalorder %s217, 41
      %s219 = scalar_select %p218, %s217, 41
      %s220 = smul.addr %s219, 8
      %s221 = scalar_lea.vmem %s4, %s220
      %s222 = smul.u32 21, %s15
      %v223 = vld [vmem:[%s209] sm:$0xff]
      %v224 = vld [vmem:[%s209 + $0x8] sm:$0xff]
      %v225 = vld [vmem:[%s209 + $0x10] sm:$0xff]
      %v226 = vld [vmem:[%s209 + $0x18] sm:$0xff]
      %v227 = vld [vmem:[%s209 + $0x20] sm:$0xff]
      %v228 = vld [vmem:[%s209 + $0x28] sm:$0xff]
      %v229 = vld [vmem:[%s209 + $0x30] sm:$0xff]
      %v230 = vld [vmem:[%s209 + $0x38] sm:$0xff]
      %v231 = vld [vmem:[%s209 + $0x40] sm:$0xff]
      %v232 = vld [vmem:[%s209 + $0x48] sm:$0xff]
      %v233 = vld [vmem:[%s209 + $0x50] sm:$0xff]
      %v234 = vld [vmem:[%s209 + $0x58] sm:$0xff]
      %v235 = vld [vmem:[%s209 + $0x60] sm:$0xff]
      %v236 = vld [vmem:[%s209 + $0x68] sm:$0xff]
      %v237 = vld [vmem:[%s209 + $0x70] sm:$0xff]
      %v238 = vld [vmem:[%s209 + $0x78] sm:$0xff]
      %v239 = vld [vmem:[%s209 + $0x80] sm:$0xff]
      %v240 = vld [vmem:[%s209 + $0x88] sm:$0xff]
      %v241 = vld [vmem:[%s209 + $0x90] sm:$0xff]
      %v242 = vld [vmem:[%s209 + $0x98] sm:$0xff]
      %v243 = vld [vmem:[%s209 + $0xa0] sm:$0xff]
      %v244 = vld [vmem:[%s2] sm:$0xff]
      %v245 = vld [vmem:[%s2 + $0x8] sm:$0xff]
      %v246 = vld [vmem:[%s2 + $0x10] sm:$0xff]
      %v247 = vld [vmem:[%s2 + $0x18] sm:$0xff]
      %v248 = vld [vmem:[%s2 + $0x20] sm:$0xff]
      %v249 = vld [vmem:[%s2 + $0x28] sm:$0xff]
      %v250 = vld [vmem:[%s215] sm:$0xff]
      %v251 = vld [vmem:[%s215 + $0x8] sm:$0xff]
      %v252 = vld [vmem:[%s215 + $0x10] sm:$0xff]
      %v253 = vld [vmem:[%s215 + $0x18] sm:$0xff]
      %v254 = vld [vmem:[%s215 + $0x20] sm:$0xff]
      %v255 = vld [vmem:[%s215 + $0x28] sm:$0xff]
      %v256 = vld [vmem:[%s215 + $0x30] sm:$0xff]
      %v257 = vld [vmem:[%s215 + $0x38] sm:$0xff]
      %v258 = vld [vmem:[%s215 + $0x40] sm:$0xff]
      %v259 = vld [vmem:[%s215 + $0x48] sm:$0xff]
      %v260 = vld [vmem:[%s215 + $0x50] sm:$0xff]
      %v261 = vld [vmem:[%s215 + $0x58] sm:$0xff]
      %v262 = vld [vmem:[%s215 + $0x60] sm:$0xff]
      %v263 = vld [vmem:[%s215 + $0x68] sm:$0xff]
      %v264 = vld [vmem:[%s215 + $0x70] sm:$0xff]
      %v265 = vld [vmem:[%s215 + $0x78] sm:$0xff]
      %v266 = vld [vmem:[%s215 + $0x80] sm:$0xff]
      %v267 = vld [vmem:[%s215 + $0x88] sm:$0xff]
      %v268 = vld [vmem:[%s215 + $0x90] sm:$0xff]
      %v269 = vld [vmem:[%s215 + $0x98] sm:$0xff]
      %v270 = vld [vmem:[%s215 + $0xa0] sm:$0xff]
      %v271 = vld [vmem:[%s3] sm:$0xff]
      %v272 = vld [vmem:[%s3 + $0x8] sm:$0xff]
      %v273 = vld [vmem:[%s3 + $0x10] sm:$0xff]
      %v274 = vld [vmem:[%s3 + $0x18] sm:$0xff]
      %v275 = vld [vmem:[%s3 + $0x20] sm:$0xff]
      %v276 = vld [vmem:[%s3 + $0x28] sm:$0xff]
      %vm277 = vcmask 392192
      %v279 = vsel %vm277, %v250, 0
      %v282 = vsel %vm277, %v251, 0
      %v285 = vsel %vm277, %v252, 0
      %v288 = vsel %vm277, %v253, 0
      %v291 = vsel %vm277, %v254, 0
      %v294 = vsel %vm277, %v255, 0
      %v297 = vsel %vm277, %v256, 0
      %v300 = vsel %vm277, %v257, 0
      %v303 = vsel %vm277, %v258, 0
      %v306 = vsel %vm277, %v259, 0
      %v309 = vsel %vm277, %v260, 0
      %v312 = vsel %vm277, %v261, 0
      %v315 = vsel %vm277, %v262, 0
      %v318 = vsel %vm277, %v263, 0
      %v321 = vsel %vm277, %v264, 0
      %v324 = vsel %vm277, %v265, 0
      %v327 = vsel %vm277, %v266, 0
      %v330 = vsel %vm277, %v267, 0
      %v333 = vsel %vm277, %v268, 0
      %v336 = vsel %vm277, %v269, 0
      %v339 = vsel %vm277, %v270, 0
      %341 = vmatprep.subr.mxu0 0.0
      %342 = vmatpush1.msra.mxu0 %v271
      %343 = vmatprep.subr.mxu0 0.0
      %344 = vmatpush1.msra.mxu0 %v272
      %345 = vmatprep.subr.mxu0 0.0
      %346 = vmatpush1.msra.mxu0 %v273
      %347 = vmatprep.subr.mxu0 0.0
      %348 = vmatpush1.msra.mxu0 %v274
      %349 = vmatprep.subr.mxu0 0.0
      %350 = vmatpush1.msra.mxu0 %v275
      %351 = vmatprep.subr.mxu0 0.0
      %352 = vmatpush1.msra.mxu0 %v276
      %353 = vmatprep.subr.mxu0 0.0
      %354 = vmatpush1.msra.mxu0 0.0
      %355 = vmatprep.subr.mxu0 0.0
      %356 = vmatpush1.msra.mxu0 0.0
      %357 = vmatprep.subr.mxu0 0.0
      %358 = vmatpush1.msra.mxu0 0.0
      %359 = vmatprep.subr.mxu0 0.0
      %360 = vmatpush1.msra.mxu0 0.0
      %361 = vmatprep.subr.mxu0 0.0
      %362 = vmatpush1.msra.mxu0 0.0
      %363 = vmatprep.subr.mxu0 0.0
      %364 = vmatpush1.msra.mxu0 0.0
      %365 = vmatprep.subr.mxu0 0.0
      %366 = vmatpush1.msra.mxu0 0.0
      %367 = vmatprep.subr.mxu0 0.0
      %368 = vmatpush1.msra.mxu0 0.0
      %369 = vmatprep.subr.mxu0 0.0
      %370 = vmatpush1.msra.mxu0 0.0
      %371 = vmatprep.subr.mxu0 0.0
      %372 = vmatpush1.msra.mxu0 0.0
      %373 = vmatprep.subr.mxu0 0.0
      %374 = vmatpush1.msra.mxu0 0.0
      %375 = vmatprep.subr.mxu0 0.0
      %376 = vmatpush1.msra.mxu0 0.0
      %377 = vmatprep.subr.mxu0 0.0
      %378 = vmatpush1.msra.mxu0 0.0
      %379 = vmatprep.subr.mxu0 0.0
      %380 = vmatpush1.msra.mxu0 0.0
      %381 = vmatprep.subr.mxu0 0.0
      %382 = vmatpush1.msra.mxu0 0.0
      %383 = vmatprep.subr.mxu0 0.0
      %384 = vmatpush1.msra.mxu0 0.0
      %385 = vmatprep.subr.mxu0 0.0
      %386 = vmatpush1.msra.mxu0 0.0
      %387 = vmatprep.subr.mxu0 0.0
      %388 = vmatpush1.msra.mxu0 0.0
      %389 = vmatprep.subr.mxu0 0.0
      %390 = vmatpush1.msra.mxu0 0.0
      %391 = vmatprep.subr.mxu0 0.0
      %392 = vmatpush1.msra.mxu0 0.0
      %393 = vmatprep.subr.mxu0 0.0
      %394 = vmatpush1.msra.mxu0 0.0
      %395 = vmatprep.subr.mxu0 0.0
      %396 = vmatpush1.msra.mxu0 0.0
      %397 = vmatprep.subr.mxu0 0.0
      %398 = vmatpush1.msra.mxu0 0.0
      %399 = vmatprep.subr.mxu0 0.0
      %400 = vmatpush1.msra.mxu0 0.0
      %401 = vmatprep.subr.mxu0 0.0
      %402 = vmatpush1.msra.mxu0 0.0
      %403 = vmatprep.subr.mxu0 0.0
      %404 = vmatpush1.msra.mxu0 0.0
      %405 = vmatprep.mubr.f32.mxu0 0.0
      %406 = vmatmul.mubr.f32.gmra.mrb[0].mxu0 %v279
      %v407 = vpop.f32.mrb[0].mxu0
      %v408 = vadd.f32 0.0, %v407
      %v409 = vpop.f32.mrb[0].mxu0
      %410 = vmatprep.mubr.f32.mxu0 0.0
      %411 = vmatmul.mubr.f32.gmra.mrb[0].mxu0 %v282
      %v412 = vpop.f32.mrb[0].mxu0
      %v413 = vadd.f32 0.0, %v412
      %v414 = vpop.f32.mrb[0].mxu0
      %415 = vmatprep.mubr.f32.mxu0 0.0
      %416 = vmatmul.mubr.f32.gmra.mrb[0].mxu0 %v285
      %v417 = vpop.f32.mrb[0].mxu0
      %v418 = vadd.f32 0.0, %v417
      %v419 = vpop.f32.mrb[0].mxu0
      %420 = vmatprep.mubr.f32.mxu0 0.0
      %421 = vmatmul.mubr.f32.gmra.mrb[0].mxu0 %v288
      %v422 = vpop.f32.mrb[0].mxu0
      %v423 = vadd.f32 0.0, %v422
      %v424 = vpop.f32.mrb[0].mxu0
      %425 = vmatprep.mubr.f32.mxu0 0.0
      %426 = vmatmul.mubr.f32.gmra.mrb[0].mxu0 %v291
      %v427 = vpop.f32.mrb[0].mxu0
      %v428 = vadd.f32 0.0, %v427
      %v429 = vpop.f32.mrb[0].mxu0
      %430 = vmatprep.mubr.f32.mxu0 0.0
      %431 = vmatmul.mubr.f32.gmra.mrb[0].mxu0 %v294
      %v432 = vpop.f32.mrb[0].mxu0
      %v433 = vadd.f32 0.0, %v432
      %v434 = vpop.f32.mrb[0].mxu0
      %435 = vmatprep.mubr.f32.mxu0 0.0
      %436 = vmatmul.mubr.f32.gmra.mrb[0].mxu0 %v297
      %v437 = vpop.f32.mrb[0].mxu0
      %v438 = vadd.f32 0.0, %v437
      %v439 = vpop.f32.mrb[0].mxu0
      %440 = vmatprep.mubr.f32.mxu0 0.0
      %441 = vmatmul.mubr.f32.gmra.mrb[0].mxu0 %v300
      %v442 = vpop.f32.mrb[0].mxu0
      %v443 = vadd.f32 0.0, %v442
      %v444 = vpop.f32.mrb[0].mxu0
      %445 = vmatprep.mubr.f32.mxu0 0.0
      %446 = vmatmul.mubr.f32.gmra.mrb[0].mxu0 %v303
      %v447 = vpop.f32.mrb[0].mxu0
      %v448 = vadd.f32 0.0, %v447
      %v449 = vpop.f32.mrb[0].mxu0
      %450 = vmatprep.mubr.f32.mxu0 0.0
      %451 = vmatmul.mubr.f32.gmra.mrb[0].mxu0 %v306
      %v452 = vpop.f32.mrb[0].mxu0
      %v453 = vadd.f32 0.0, %v452
      %v454 = vpop.f32.mrb[0].mxu0
      %455 = vmatprep.mubr.f32.mxu0 0.0
      %456 = vmatmul.mubr.f32.gmra.mrb[0].mxu0 %v309
      %v457 = vpop.f32.mrb[0].mxu0
      %v458 = vadd.f32 0.0, %v457
      %v459 = vpop.f32.mrb[0].mxu0
      %460 = vmatprep.mubr.f32.mxu0 0.0
      %461 = vmatmul.mubr.f32.gmra.mrb[0].mxu0 %v312
      %v462 = vpop.f32.mrb[0].mxu0
      %v463 = vadd.f32 0.0, %v462
      %v464 = vpop.f32.mrb[0].mxu0
      %465 = vmatprep.mubr.f32.mxu0 0.0
      %466 = vmatmul.mubr.f32.gmra.mrb[0].mxu0 %v315
      %v467 = vpop.f32.mrb[0].mxu0
      %v468 = vadd.f32 0.0, %v467
      %v469 = vpop.f32.mrb[0].mxu0
      %470 = vmatprep.mubr.f32.mxu0 0.0
      %471 = vmatmul.mubr.f32.gmra.mrb[0].mxu0 %v318
      %v472 = vpop.f32.mrb[0].mxu0
      %v473 = vadd.f32 0.0, %v472
      %v474 = vpop.f32.mrb[0].mxu0
      %475 = vmatprep.mubr.f32.mxu0 0.0
      %476 = vmatmul.mubr.f32.gmra.mrb[0].mxu0 %v321
      %v477 = vpop.f32.mrb[0].mxu0
      %v478 = vadd.f32 0.0, %v477
      %v479 = vpop.f32.mrb[0].mxu0
      %480 = vmatprep.mubr.f32.mxu0 0.0
      %481 = vmatmul.mubr.f32.gmra.mrb[0].mxu0 %v324
      %v482 = vpop.f32.mrb[0].mxu0
      %v483 = vadd.f32 0.0, %v482
      %v484 = vpop.f32.mrb[0].mxu0
      %485 = vmatprep.mubr.f32.mxu0 0.0
      %486 = vmatmul.mubr.f32.gmra.mrb[0].mxu0 %v327
      %v487 = vpop.f32.mrb[0].mxu0
      %v488 = vadd.f32 0.0, %v487
      %v489 = vpop.f32.mrb[0].mxu0
      %490 = vmatprep.mubr.f32.mxu0 0.0
      %491 = vmatmul.mubr.f32.gmra.mrb[0].mxu0 %v330
      %v492 = vpop.f32.mrb[0].mxu0
      %v493 = vadd.f32 0.0, %v492
      %v494 = vpop.f32.mrb[0].mxu0
      %495 = vmatprep.mubr.f32.mxu0 0.0
      %496 = vmatmul.mubr.f32.gmra.mrb[0].mxu0 %v333
      %v497 = vpop.f32.mrb[0].mxu0
      %v498 = vadd.f32 0.0, %v497
      %v499 = vpop.f32.mrb[0].mxu0
      %500 = vmatprep.mubr.f32.mxu0 0.0
      %501 = vmatmul.mubr.f32.gmra.mrb[0].mxu0 %v336
      %v502 = vpop.f32.mrb[0].mxu0
      %v503 = vadd.f32 0.0, %v502
      %v504 = vpop.f32.mrb[0].mxu0
      %505 = vmatprep.mubr.f32.mxu0 0.0
      %506 = vmatmul.mubr.f32.gmra.mrb[0].mxu0 %v339
      %v507 = vpop.f32.mrb[0].mxu0
      %v508 = vadd.f32 0.0, %v507
      %v509 = vpop.f32.mrb[0].mxu0
      %510 = vdwg.mxu0
      %v512 = vsel %vm277, %v223, 0
      %v515 = vsel %vm277, %v224, 0
      %v518 = vsel %vm277, %v225, 0
      %v521 = vsel %vm277, %v226, 0
      %v524 = vsel %vm277, %v227, 0
      %v527 = vsel %vm277, %v228, 0
      %v530 = vsel %vm277, %v229, 0
      %v533 = vsel %vm277, %v230, 0
      %v536 = vsel %vm277, %v231, 0
      %v539 = vsel %vm277, %v232, 0
      %v542 = vsel %vm277, %v233, 0
      %v545 = vsel %vm277, %v234, 0
      %v548 = vsel %vm277, %v235, 0
      %v551 = vsel %vm277, %v236, 0
      %v554 = vsel %vm277, %v237, 0
      %v557 = vsel %vm277, %v238, 0
      %v560 = vsel %vm277, %v239, 0
      %v563 = vsel %vm277, %v240, 0
      %v566 = vsel %vm277, %v241, 0
      %v569 = vsel %vm277, %v242, 0
      %v572 = vsel %vm277, %v243, 0
      %574 = vmatprep.subr.mxu0 0.0
      %575 = vmatpush1.msra.mxu0 %v244
      %576 = vmatprep.subr.mxu0 0.0
      %577 = vmatpush1.msra.mxu0 %v245
      %578 = vmatprep.subr.mxu0 0.0
      %579 = vmatpush1.msra.mxu0 %v246
      %580 = vmatprep.subr.mxu0 0.0
      %581 = vmatpush1.msra.mxu0 %v247
      %582 = vmatprep.subr.mxu0 0.0
      %583 = vmatpush1.msra.mxu0 %v248
      %584 = vmatprep.subr.mxu0 0.0
      %585 = vmatpush1.msra.mxu0 %v249
      %586 = vmatprep.subr.mxu0 0.0
      %587 = vmatpush1.msra.mxu0 0.0
      %588 = vmatprep.subr.mxu0 0.0
      %589 = vmatpush1.msra.mxu0 0.0
      %590 = vmatprep.subr.mxu0 0.0
      %591 = vmatpush1.msra.mxu0 0.0
      %592 = vmatprep.subr.mxu0 0.0
      %593 = vmatpush1.msra.mxu0 0.0
      %594 = vmatprep.subr.mxu0 0.0
      %595 = vmatpush1.msra.mxu0 0.0
      %596 = vmatprep.subr.mxu0 0.0
      %597 = vmatpush1.msra.mxu0 0.0
      %598 = vmatprep.subr.mxu0 0.0
      %599 = vmatpush1.msra.mxu0 0.0
      %600 = vmatprep.subr.mxu0 0.0
      %601 = vmatpush1.msra.mxu0 0.0
      %602 = vmatprep.subr.mxu0 0.0
      %603 = vmatpush1.msra.mxu0 0.0
      %604 = vmatprep.subr.mxu0 0.0
      %605 = vmatpush1.msra.mxu0 0.0
      %606 = vmatprep.subr.mxu0 0.0
      %607 = vmatpush1.msra.mxu0 0.0
      %608 = vmatprep.subr.mxu0 0.0
      %609 = vmatpush1.msra.mxu0 0.0
      %610 = vmatprep.subr.mxu0 0.0
      %611 = vmatpush1.msra.mxu0 0.0
      %612 = vmatprep.subr.mxu0 0.0
      %613 = vmatpush1.msra.mxu0 0.0
      %614 = vmatprep.subr.mxu0 0.0
      %615 = vmatpush1.msra.mxu0 0.0
      %616 = vmatprep.subr.mxu0 0.0
      %617 = vmatpush1.msra.mxu0 0.0
      %618 = vmatprep.subr.mxu0 0.0
      %619 = vmatpush1.msra.mxu0 0.0
      %620 = vmatprep.subr.mxu0 0.0
      %621 = vmatpush1.msra.mxu0 0.0
      %622 = vmatprep.subr.mxu0 0.0
      %623 = vmatpush1.msra.mxu0 0.0
      %624 = vmatprep.subr.mxu0 0.0
      %625 = vmatpush1.msra.mxu0 0.0
      %626 = vmatprep.subr.mxu0 0.0
      %627 = vmatpush1.msra.mxu0 0.0
      %628 = vmatprep.subr.mxu0 0.0
      %629 = vmatpush1.msra.mxu0 0.0
      %630 = vmatprep.subr.mxu0 0.0
      %631 = vmatpush1.msra.mxu0 0.0
      %632 = vmatprep.subr.mxu0 0.0
      %633 = vmatpush1.msra.mxu0 0.0
      %634 = vmatprep.subr.mxu0 0.0
      %635 = vmatpush1.msra.mxu0 0.0
      %636 = vmatprep.subr.mxu0 0.0
      %637 = vmatpush1.msra.mxu0 0.0
      %638 = vmatprep.mubr.f32.mxu0 0.0
      %639 = vmatmul.mubr.f32.gmra.mrb[0].mxu0 %v512
      %v640 = vpop.f32.mrb[0].mxu0
      %v641 = vadd.f32 %v408, %v640
      %v642 = vpop.f32.mrb[0].mxu0
      %643 = vmatprep.mubr.f32.mxu0 0.0
      %644 = vmatmul.mubr.f32.gmra.mrb[0].mxu0 %v515
      %v645 = vpop.f32.mrb[0].mxu0
      %v646 = vadd.f32 %v413, %v645
      %v647 = vpop.f32.mrb[0].mxu0
      %648 = vmatprep.mubr.f32.mxu0 0.0
      %649 = vmatmul.mubr.f32.gmra.mrb[0].mxu0 %v518
      %v650 = vpop.f32.mrb[0].mxu0
      %v651 = vadd.f32 %v418, %v650
      %v652 = vpop.f32.mrb[0].mxu0
      %653 = vmatprep.mubr.f32.mxu0 0.0
      %654 = vmatmul.mubr.f32.gmra.mrb[0].mxu0 %v521
      %v655 = vpop.f32.mrb[0].mxu0
      %v656 = vadd.f32 %v423, %v655
      %v657 = vpop.f32.mrb[0].mxu0
      %658 = vmatprep.mubr.f32.mxu0 0.0
      %659 = vmatmul.mubr.f32.gmra.mrb[0].mxu0 %v524
      %v660 = vpop.f32.mrb[0].mxu0
      %v661 = vadd.f32 %v428, %v660
      %v662 = vpop.f32.mrb[0].mxu0
      %663 = vmatprep.mubr.f32.mxu0 0.0
      %664 = vmatmul.mubr.f32.gmra.mrb[0].mxu0 %v527
      %v665 = vpop.f32.mrb[0].mxu0
      %v666 = vadd.f32 %v433, %v665
      %v667 = vpop.f32.mrb[0].mxu0
      %668 = vmatprep.mubr.f32.mxu0 0.0
      %669 = vmatmul.mubr.f32.gmra.mrb[0].mxu0 %v530
      %v670 = vpop.f32.mrb[0].mxu0
      %v671 = vadd.f32 %v438, %v670
      %v672 = vpop.f32.mrb[0].mxu0
      %673 = vmatprep.mubr.f32.mxu0 0.0
      %674 = vmatmul.mubr.f32.gmra.mrb[0].mxu0 %v533
      %v675 = vpop.f32.mrb[0].mxu0
      %v676 = vadd.f32 %v443, %v675
      %v677 = vpop.f32.mrb[0].mxu0
      %678 = vmatprep.mubr.f32.mxu0 0.0
      %679 = vmatmul.mubr.f32.gmra.mrb[0].mxu0 %v536
      %v680 = vpop.f32.mrb[0].mxu0
      %v681 = vadd.f32 %v448, %v680
      %v682 = vpop.f32.mrb[0].mxu0
      %683 = vmatprep.mubr.f32.mxu0 0.0
      %684 = vmatmul.mubr.f32.gmra.mrb[0].mxu0 %v539
      %v685 = vpop.f32.mrb[0].mxu0
      %v686 = vadd.f32 %v453, %v685
      %v687 = vpop.f32.mrb[0].mxu0
      %688 = vmatprep.mubr.f32.mxu0 0.0
      %689 = vmatmul.mubr.f32.gmra.mrb[0].mxu0 %v542
      %v690 = vpop.f32.mrb[0].mxu0
      %v691 = vadd.f32 %v458, %v690
      %v692 = vpop.f32.mrb[0].mxu0
      %693 = vmatprep.mubr.f32.mxu0 0.0
      %694 = vmatmul.mubr.f32.gmra.mrb[0].mxu0 %v545
      %v695 = vpop.f32.mrb[0].mxu0
      %v696 = vadd.f32 %v463, %v695
      %v697 = vpop.f32.mrb[0].mxu0
      %698 = vmatprep.mubr.f32.mxu0 0.0
      %699 = vmatmul.mubr.f32.gmra.mrb[0].mxu0 %v548
      %v700 = vpop.f32.mrb[0].mxu0
      %v701 = vadd.f32 %v468, %v700
      %v702 = vpop.f32.mrb[0].mxu0
      %703 = vmatprep.mubr.f32.mxu0 0.0
      %704 = vmatmul.mubr.f32.gmra.mrb[0].mxu0 %v551
      %v705 = vpop.f32.mrb[0].mxu0
      %v706 = vadd.f32 %v473, %v705
      %v707 = vpop.f32.mrb[0].mxu0
      %708 = vmatprep.mubr.f32.mxu0 0.0
      %709 = vmatmul.mubr.f32.gmra.mrb[0].mxu0 %v554
      %v710 = vpop.f32.mrb[0].mxu0
      %v711 = vadd.f32 %v478, %v710
      %v712 = vpop.f32.mrb[0].mxu0
      %713 = vmatprep.mubr.f32.mxu0 0.0
      %714 = vmatmul.mubr.f32.gmra.mrb[0].mxu0 %v557
      %v715 = vpop.f32.mrb[0].mxu0
      %v716 = vadd.f32 %v483, %v715
      %v717 = vpop.f32.mrb[0].mxu0
      %718 = vmatprep.mubr.f32.mxu0 0.0
      %719 = vmatmul.mubr.f32.gmra.mrb[0].mxu0 %v560
      %v720 = vpop.f32.mrb[0].mxu0
      %v721 = vadd.f32 %v488, %v720
      %v722 = vpop.f32.mrb[0].mxu0
      %723 = vmatprep.mubr.f32.mxu0 0.0
      %724 = vmatmul.mubr.f32.gmra.mrb[0].mxu0 %v563
      %v725 = vpop.f32.mrb[0].mxu0
      %v726 = vadd.f32 %v493, %v725
      %v727 = vpop.f32.mrb[0].mxu0
      %728 = vmatprep.mubr.f32.mxu0 0.0
      %729 = vmatmul.mubr.f32.gmra.mrb[0].mxu0 %v566
      %v730 = vpop.f32.mrb[0].mxu0
      %v731 = vadd.f32 %v498, %v730
      %v732 = vpop.f32.mrb[0].mxu0
      %733 = vmatprep.mubr.f32.mxu0 0.0
      %734 = vmatmul.mubr.f32.gmra.mrb[0].mxu0 %v569
      %v735 = vpop.f32.mrb[0].mxu0
      %v736 = vadd.f32 %v503, %v735
      %v737 = vpop.f32.mrb[0].mxu0
      %738 = vmatprep.mubr.f32.mxu0 0.0
      %739 = vmatmul.mubr.f32.gmra.mrb[0].mxu0 %v572
      %v740 = vpop.f32.mrb[0].mxu0
      %v741 = vadd.f32 %v508, %v740
      %v742 = vpop.f32.mrb[0].mxu0
      %743 = vdwg.mxu0
      %v744 = vmax.f32 %v641, 0.0
      %v745 = vmax.f32 %v646, 0.0
      %v746 = vmax.f32 %v651, 0.0
      %v747 = vmax.f32 %v656, 0.0
      %v748 = vmax.f32 %v661, 0.0
      %v749 = vmax.f32 %v666, 0.0
      %v750 = vmax.f32 %v671, 0.0
      %v751 = vmax.f32 %v676, 0.0
      %v752 = vmax.f32 %v681, 0.0
      %v753 = vmax.f32 %v686, 0.0
      %v754 = vmax.f32 %v691, 0.0
      %v755 = vmax.f32 %v696, 0.0
      %v756 = vmax.f32 %v701, 0.0
      %v757 = vmax.f32 %v706, 0.0
      %v758 = vmax.f32 %v711, 0.0
      %v759 = vmax.f32 %v716, 0.0
      %v760 = vmax.f32 %v721, 0.0
      %v761 = vmax.f32 %v726, 0.0
      %v762 = vmax.f32 %v731, 0.0
      %v763 = vmax.f32 %v736, 0.0
      %v764 = vmax.f32 %v741, 0.0
      %v765 = vmul.f32 %v744, %v744
      %v766 = vmul.f32 %v745, %v745
      %v767 = vmul.f32 %v746, %v746
      %v768 = vmul.f32 %v747, %v747
      %v769 = vmul.f32 %v748, %v748
      %v770 = vmul.f32 %v749, %v749
      %v771 = vmul.f32 %v750, %v750
      %v772 = vmul.f32 %v751, %v751
      %v773 = vmul.f32 %v752, %v752
      %v774 = vmul.f32 %v753, %v753
      %v775 = vmul.f32 %v754, %v754
      %v776 = vmul.f32 %v755, %v755
      %v777 = vmul.f32 %v756, %v756
      %v778 = vmul.f32 %v757, %v757
      %v779 = vmul.f32 %v758, %v758
      %v780 = vmul.f32 %v759, %v759
      %v781 = vmul.f32 %v760, %v760
      %v782 = vmul.f32 %v761, %v761
      %v783 = vmul.f32 %v762, %v762
      %v784 = vmul.f32 %v763, %v763
      %v785 = vmul.f32 %v764, %v764
      %vm786 = vcmask 326656
      %v787 = vsel %vm786, %v765, 0.0
      %788 = vadd.xlane.f32.xlu0 %v787
      %v789 = vpop.xlane.xlu0 %788
      %v790 = vsel %vm786, %v766, 0.0
      %791 = vadd.xlane.f32.xlu0 %v790
      %v792 = vpop.xlane.xlu0 %791
      %v793 = vsel %vm786, %v767, 0.0
      %794 = vadd.xlane.f32.xlu0 %v793
      %v795 = vpop.xlane.xlu0 %794
      %v796 = vsel %vm786, %v768, 0.0
      %797 = vadd.xlane.f32.xlu0 %v796
      %v798 = vpop.xlane.xlu0 %797
      %v799 = vsel %vm786, %v769, 0.0
      %800 = vadd.xlane.f32.xlu0 %v799
      %v801 = vpop.xlane.xlu0 %800
      %v802 = vsel %vm786, %v770, 0.0
      %803 = vadd.xlane.f32.xlu0 %v802
      %v804 = vpop.xlane.xlu0 %803
      %v805 = vsel %vm786, %v771, 0.0
      %806 = vadd.xlane.f32.xlu0 %v805
      %v807 = vpop.xlane.xlu0 %806
      %v808 = vsel %vm786, %v772, 0.0
      %809 = vadd.xlane.f32.xlu0 %v808
      %v810 = vpop.xlane.xlu0 %809
      %v811 = vsel %vm786, %v773, 0.0
      %812 = vadd.xlane.f32.xlu0 %v811
      %v813 = vpop.xlane.xlu0 %812
      %v814 = vsel %vm786, %v774, 0.0
      %815 = vadd.xlane.f32.xlu0 %v814
      %v816 = vpop.xlane.xlu0 %815
      %v817 = vsel %vm786, %v775, 0.0
      %818 = vadd.xlane.f32.xlu0 %v817
      %v819 = vpop.xlane.xlu0 %818
      %v820 = vsel %vm786, %v776, 0.0
      %821 = vadd.xlane.f32.xlu0 %v820
      %v822 = vpop.xlane.xlu0 %821
      %v823 = vsel %vm786, %v777, 0.0
      %824 = vadd.xlane.f32.xlu0 %v823
      %v825 = vpop.xlane.xlu0 %824
      %v826 = vsel %vm786, %v778, 0.0
      %827 = vadd.xlane.f32.xlu0 %v826
      %v828 = vpop.xlane.xlu0 %827
      %v829 = vsel %vm786, %v779, 0.0
      %830 = vadd.xlane.f32.xlu0 %v829
      %v831 = vpop.xlane.xlu0 %830
      %v832 = vsel %vm786, %v780, 0.0
      %833 = vadd.xlane.f32.xlu0 %v832
      %v834 = vpop.xlane.xlu0 %833
      %v835 = vsel %vm786, %v781, 0.0
      %836 = vadd.xlane.f32.xlu0 %v835
      %v837 = vpop.xlane.xlu0 %836
      %v838 = vsel %vm786, %v782, 0.0
      %839 = vadd.xlane.f32.xlu0 %v838
      %v840 = vpop.xlane.xlu0 %839
      %v841 = vsel %vm786, %v783, 0.0
      %842 = vadd.xlane.f32.xlu0 %v841
      %v843 = vpop.xlane.xlu0 %842
      %v844 = vsel %vm786, %v784, 0.0
      %845 = vadd.xlane.f32.xlu0 %v844
      %v846 = vpop.xlane.xlu0 %845
      %v847 = vsel %vm786, %v785, 0.0
      %848 = vadd.xlane.f32.xlu0 %v847
      %v849 = vpop.xlane.xlu0 %848
      %v850 = vmax.f32 %v789, 1e-24
      %v851 = vmax.f32 %v792, 1e-24
      %v852 = vmax.f32 %v795, 1e-24
      %v853 = vmax.f32 %v798, 1e-24
      %v854 = vmax.f32 %v801, 1e-24
      %v855 = vmax.f32 %v804, 1e-24
      %v856 = vmax.f32 %v807, 1e-24
      %v857 = vmax.f32 %v810, 1e-24
      %v858 = vmax.f32 %v813, 1e-24
      %v859 = vmax.f32 %v816, 1e-24
      %v860 = vmax.f32 %v819, 1e-24
      %v861 = vmax.f32 %v822, 1e-24
      %v862 = vmax.f32 %v825, 1e-24
      %v863 = vmax.f32 %v828, 1e-24
      %v864 = vmax.f32 %v831, 1e-24
      %v865 = vmax.f32 %v834, 1e-24
      %v866 = vmax.f32 %v837, 1e-24
      %v867 = vmax.f32 %v840, 1e-24
      %v868 = vmax.f32 %v843, 1e-24
      %v869 = vmax.f32 %v846, 1e-24
      %v870 = vmax.f32 %v849, 1e-24
      %v871 = vrsqrt.pop %v850
      %v872 = vrsqrt.pop %v851
      %v873 = vrsqrt.pop %v852
      %v874 = vrsqrt.pop %v853
      %v875 = vrsqrt.pop %v854
      %v876 = vrsqrt.pop %v855
      %v877 = vrsqrt.pop %v856
      %v878 = vrsqrt.pop %v857
      %v879 = vrsqrt.pop %v858
      %v880 = vrsqrt.pop %v859
      %v881 = vrsqrt.pop %v860
      %v882 = vrsqrt.pop %v861
      %v883 = vrsqrt.pop %v862
      %v884 = vrsqrt.pop %v863
      %v885 = vrsqrt.pop %v864
      %v886 = vrsqrt.pop %v865
      %v887 = vrsqrt.pop %v866
      %v888 = vrsqrt.pop %v867
      %v889 = vrsqrt.pop %v868
      %v890 = vrsqrt.pop %v869
      %v891 = vrsqrt.pop %v870
      %v892 = vmul.f32 %v744, %v871
      %v893 = vmul.f32 %v745, %v872
      %v894 = vmul.f32 %v746, %v873
      %v895 = vmul.f32 %v747, %v874
      %v896 = vmul.f32 %v748, %v875
      %v897 = vmul.f32 %v749, %v876
      %v898 = vmul.f32 %v750, %v877
      %v899 = vmul.f32 %v751, %v878
      %v900 = vmul.f32 %v752, %v879
      %v901 = vmul.f32 %v753, %v880
      %v902 = vmul.f32 %v754, %v881
      %v903 = vmul.f32 %v755, %v882
      %v904 = vmul.f32 %v756, %v883
      %v905 = vmul.f32 %v757, %v884
      %v906 = vmul.f32 %v758, %v885
      %v907 = vmul.f32 %v759, %v886
      %v908 = vmul.f32 %v760, %v887
      %v909 = vmul.f32 %v761, %v888
      %v910 = vmul.f32 %v762, %v889
      %v911 = vmul.f32 %v763, %v890
      %v912 = vmul.f32 %v764, %v891
      %913 = vst.msk [vmem:[%s221] sm:$0xff] %vm786, %v892
      %914 = vst.msk [vmem:[%s221 + $0x8] sm:$0xff] %vm786, %v893
      %915 = vst.msk [vmem:[%s221 + $0x10] sm:$0xff] %vm786, %v894
      %916 = vst.msk [vmem:[%s221 + $0x18] sm:$0xff] %vm786, %v895
      %917 = vst.msk [vmem:[%s221 + $0x20] sm:$0xff] %vm786, %v896
      %918 = vst.msk [vmem:[%s221 + $0x28] sm:$0xff] %vm786, %v897
      %919 = vst.msk [vmem:[%s221 + $0x30] sm:$0xff] %vm786, %v898
      %920 = vst.msk [vmem:[%s221 + $0x38] sm:$0xff] %vm786, %v899
      %921 = vst.msk [vmem:[%s221 + $0x40] sm:$0xff] %vm786, %v900
      %922 = vst.msk [vmem:[%s221 + $0x48] sm:$0xff] %vm786, %v901
      %923 = vst.msk [vmem:[%s221 + $0x50] sm:$0xff] %vm786, %v902
      %924 = vst.msk [vmem:[%s221 + $0x58] sm:$0xff] %vm786, %v903
      %925 = vst.msk [vmem:[%s221 + $0x60] sm:$0xff] %vm786, %v904
      %926 = vst.msk [vmem:[%s221 + $0x68] sm:$0xff] %vm786, %v905
      %927 = vst.msk [vmem:[%s221 + $0x70] sm:$0xff] %vm786, %v906
      %928 = vst.msk [vmem:[%s221 + $0x78] sm:$0xff] %vm786, %v907
      %929 = vst.msk [vmem:[%s221 + $0x80] sm:$0xff] %vm786, %v908
      %930 = vst.msk [vmem:[%s221 + $0x88] sm:$0xff] %vm786, %v909
      %931 = vst.msk [vmem:[%s221 + $0x90] sm:$0xff] %vm786, %v910
      %932 = vst.msk [vmem:[%s221 + $0x98] sm:$0xff] %vm786, %v911
      %933 = vst.msk [vmem:[%s221 + $0xa0] sm:$0xff] %vm786, %v912
      %s934 = smul.u32 21, %s15
      %p935 = scmp.lt.s32.totalorder %s934, 41
      %s936 = scalar_select %p935, %s934, 41
      %s937 = smul.addr %s936, 8
      %s938 = scalar_lea.vmem %s4, %s937
      // Predicated region
      $region37: #{tpu_custom_call.1} parent=35 // pred_check
        %p939 = pneg %p127
      $region38: #{tpu_custom_call.1} parent=35 // pred_check_branch
        %941 = sbr.rel (%p939) target = $region40
      $region39: #{tpu_custom_call.1} parent=35 // pred_region
        %s942 = smul.u32 21, %s15
      $region40: #{tpu_custom_call.1} parent=35 // pred_fallthru
        _
    $region36: #{tpu_custom_call.1} parent=5 // pred_fallthru
      _
    %p943 = scmp.le.s32.totalorder 2, %s10
    // Predicated region
    $region41: #{tpu_custom_call.1} parent=5 // pred_check
      %p944 = pneg %p943
    $region42: #{tpu_custom_call.1} parent=5 // pred_check_branch
      %946 = sbr.rel (%p944) target = $region44
    $region43: #{tpu_custom_call.1} parent=5 // pred_region
      %s947 = ssub.s32 %s10, 2
      // Predicated region
      $region45: #{tpu_custom_call.1} parent=43 // pred_check
        %p948 = pneg %p133
      $region46: #{tpu_custom_call.1} parent=43 // pred_check_branch
        %950 = sbr.rel (%p948) target = $region48
      $region47: #{tpu_custom_call.1} parent=43 // pred_region
        %s951 = smul.u32 21, %s16
        %p952 = scmp.lt.s32.totalorder %s951, 41
        %s953 = scalar_select %p952, %s951, 41
        %s954 = smul.addr %s953, 8
        %s955 = scalar_lea.vmem %s4, %s954
      $region48: #{tpu_custom_call.1} parent=43 // pred_fallthru
        _
    $region44: #{tpu_custom_call.1} parent=5 // pred_fallthru
      _
  $region6: #{tpu_custom_call.1} parent=0 // loop_footer
    %s14 = sadd.s32 1, %s10
  $region7: #{tpu_custom_call.1} parent=0 // loop_footer_branch
    %9 = sbr.rel target = $region3
  $region8: #{tpu_custom_call.1} parent=0 // loop_exit
    _

</llo_original>
